<compile_context>
chip_gen: v5e
topology: v5e:2x2
jax: 0.10.0
libtpu: 0.0.40
codegen_flags: <defaults>
</compile_context>

<pallas_src>
import functools

import jax
import jax.numpy as jnp
from jax.experimental import pallas as pl
from jax.experimental.pallas import tpu as pltpu

_LANE = 128                       # vreg lane width
_SUB = 8                          # vreg sublane width
_CHUNK_ROWS = 64                  # inner-loop chunk; bounds vreg live ranges
_MAX_TILE_ROWS = 2048             # ~1-4 MiB per stream per grid step
_VMEM_INPUT_BUDGET = 12 * 1024 * 1024   # double-buffered inputs; < v5e 16 MiB default


def _round_up(x, m):
    return (x + m - 1) // m * m


def _pick_tile_rows(rows, bytes_per_row):
    """Largest row-tile (multiple of 8, multiple of _CHUNK_ROWS when >=64) that
    fits the double-buffered VMEM budget.  Never collapses below 8."""
    cap = min(_MAX_TILE_ROWS, rows, _VMEM_INPUT_BUDGET // (2 * bytes_per_row))
    if cap >= _CHUNK_ROWS:
        return cap - cap % _CHUNK_ROWS
    return max(_SUB, cap - cap % _SUB)


def _recall_kernel(mode, ignore_idx, rows, tile_r, chunk, needs_mask, *refs):
    # mode: 0 = no weights, ignore_idx != 1  -> weight multiply elided
    #       1 = no weights, ignore_idx == 1  -> degenerate reference semantics
    #           (tp = cnt = 0 -> value is NaN), kept for parity with PyTorch.
    #       2 = explicit weights
    if mode == 2:
        labels_ref, preds_ref, w_ref, out_ref = refs
    else:
        labels_ref, preds_ref, out_ref = refs

    j = pl.program_id(1)        # row-tile (reduction axis, "arbitrary", last)

    @pl.when(j == 0)
    def _init():
        out_ref[...] = jnp.zeros_like(out_ref)

    num_chunks = tile_r // chunk
    groups = chunk // _SUB

    def body(c, carry):
        tp_acc, pos_acc = carry
        r0 = pl.multiple_of(c * chunk, chunk)
        sl = pl.ds(r0, chunk)

        labels = labels_ref[0, sl, :]        # (chunk, 128), native int dtype
        p0 = preds_ref[0, 0, sl, :]          # (chunk, 128), native float dtype
        p1 = preds_ref[0, 1, sl, :]

        # torch.max(dim=1) returns the FIRST maximal index on ties, so
        # pred_label == 1  <=>  preds[:, 1] strictly greater than preds[:, 0].
        pred_trues = p1 > p0
        trues = labels == 1
        if needs_mask:
            # Ragged last row-block: mask rows beyond the valid extent.
            row = jax.lax.broadcasted_iota(jnp.int32, (chunk, _LANE), 0)
            trues = trues & ((j * tile_r + c * chunk + row) < rows)
        tp_m = trues & pred_trues

        if mode == 0:
            # labels == 1 already implies labels != ignore_idx -> weight is 1.
            tp_c = tp_m.astype(jnp.float32)
            pos_c = trues.astype(jnp.float32)
        elif mode == 1:
            keep = labels != ignore_idx
            tp_c = (tp_m & keep).astype(jnp.float32)
            pos_c = (trues & keep).astype(jnp.float32)
        else:
            w = w_ref[0, sl, :].astype(jnp.float32)
            tp_c = jnp.where(tp_m, w, 0.0)       # select, not mask*mul
            pos_c = jnp.where(trues, w, 0.0)

        # Fold the chunk to one (8,128) partial with pure VALU adds.
        tp_acc = tp_acc + tp_c.reshape(groups, _SUB, _LANE).sum(axis=0)
        pos_acc = pos_acc + pos_c.reshape(groups, _SUB, _LANE).sum(axis=0)
        return tp_acc, pos_acc

    zero = jnp.zeros((_SUB, _LANE), jnp.float32)
    tp_acc, pos_acc = jax.lax.fori_loop(0, num_chunks, body, (zero, zero),
                                        unroll=min(num_chunks, 2))

    # Output block (1, 2, 8, 128) is resident across j (revisited) and is the
    # running accumulator; it writes back to HBM once per batch index.
    out_ref[0, 0] += tp_acc
    out_ref[0, 1] += pos_acc


def recall_counts(labels, preds, weights=None, ignore_idx=-1):
    """Pallas-backed reduction.

    labels: (N, *Ds) int; preds: (N, 2, *Ds) float; weights: (N, *Ds) or None.
    Returns (true_positives, count) as f32 scalars, count = TP + FN.
    Note: pass labels/weights in their narrowest dtype upstream; no wrapper casts here.
    """
    n = labels.shape[0]
    p = 1
    for d in labels.shape[1:]:
        p *= int(d)
    assert preds.shape[0] == n and preds.shape[1] == 2

    # Lane-dense slab: view the flattened spatial axis as (rows, 128).
    # Pad only when p is not 128-aligned (or tiny); padded labels (=0) and
    # weights (=0) never contribute.
    p_pad = max(_round_up(p, _LANE), _SUB * _LANE)
    pad = p_pad - p
    rows = p_pad // _LANE

    has_weights = weights is not None

    labels2 = labels.reshape(n, p)
    preds3 = preds.reshape(n, 2, p)          # free contiguous reshape, no class slices
    if pad:
        labels2 = jnp.pad(labels2, ((0, 0), (0, pad)))
        preds3 = jnp.pad(preds3, ((0, 0), (0, 0), (0, pad)))
    labels3 = labels2.reshape(n, rows, _LANE)
    preds4 = preds3.reshape(n, 2, rows, _LANE)

    bytes_per_row = _LANE * (labels.dtype.itemsize + 2 * preds.dtype.itemsize
                             + (weights.dtype.itemsize if has_weights else 0))
    tile_r = _pick_tile_rows(rows, bytes_per_row)
    chunk = min(_CHUNK_ROWS, tile_r)
    grid_j = pl.cdiv(rows, tile_r)           # ragged last block masked in-kernel
    needs_mask = grid_j * tile_r > rows

    inputs = [labels3, preds4]
    in_specs = [
        pl.BlockSpec((1, tile_r, _LANE), lambda i, j: (i, j, 0)),
        pl.BlockSpec((1, 2, tile_r, _LANE), lambda i, j: (i, 0, j, 0)),
    ]
    if has_weights:
        w2 = weights.reshape(n, p)
        if pad:
            w2 = jnp.pad(w2, ((0, 0), (0, pad)))
        inputs.append(w2.reshape(n, rows, _LANE))
        in_specs.append(pl.BlockSpec((1, tile_r, _LANE), lambda i, j: (i, j, 0)))

    mode = 2 if has_weights else (0 if ignore_idx != 1 else 1)
    kernel = functools.partial(_recall_kernel, mode, ignore_idx,
                               rows, tile_r, chunk, needs_mask)

    out_shape = jax.ShapeDtypeStruct((n, 2, _SUB, _LANE), jnp.float32)
    bytes_accessed = (sum(int(x.size) * x.dtype.itemsize for x in inputs)
                      + n * 2 * _SUB * _LANE * 4)

    partials = pl.pallas_call(
        kernel,
        grid=(n, grid_j),
        in_specs=in_specs,
        # Lane-dense per-batch partial rows; output revisited only across the
        # (arbitrary) reduction axis, so the batch axis is megacore-safe.
        out_specs=pl.BlockSpec((1, 2, _SUB, _LANE), lambda i, j: (i, 0, 0, 0)),
        out_shape=out_shape,
        compiler_params=pltpu.CompilerParams(
            dimension_semantics=("parallel", "arbitrary")),
        cost_estimate=pl.CostEstimate(flops=0, transcendentals=0,
                                      bytes_accessed=bytes_accessed),
    )(*inputs)

    sums = jnp.sum(partials, axis=(0, 2, 3))    # (2,): [tp, cnt]
    return sums[0], sums[1]


class Recall:
    """JAX port of torchplus Recall (2-class argmax path), kernel-backed reduction."""

    def __init__(self, dim=1, ignore_idx=-1, threshold=0.5):
        assert dim == 1, "this port assumes class dim = 1 (NCHW)"
        self._ignore_idx = ignore_idx
        self._threshold = threshold
        self.total = jnp.zeros((1,), jnp.float32)
        self.count = jnp.zeros((1,), jnp.float32)

    def forward(self, labels, preds, weights=None):
        # labels: (N, *Ds) int ; preds: (N, 2, *Ds) float.
        assert preds.shape[1] == 2, "precision only support 2 class"
        # TODO(synk): the C==1 sigmoid/threshold branch of the reference is not implemented.
        tp, cnt = recall_counts(labels, preds, weights, self._ignore_idx)
        upd = (cnt > 0).astype(jnp.float32)
        self.count = self.count + upd * cnt
        self.total = self.total + upd * tp
        return self.value

    @property
    def value(self):
        return self.total / self.count

    def clear(self):
        self.total = jnp.zeros((1,), jnp.float32)
        self.count = jnp.zeros((1,), jnp.float32)


def _ref_counts(labels, preds, weights=None, ignore_idx=-1):
    n = labels.shape[0]
    lab = labels.reshape(n, -1)
    pred1 = (preds[:, 1] > preds[:, 0]).reshape(n, -1)
    if weights is None:
        w = (lab != ignore_idx).astype(jnp.float32)
    else:
        w = weights.reshape(n, -1).astype(jnp.float32)
    tp = jnp.sum(jnp.where((lab == 1) & pred1, w, 0.0))
    cnt = jnp.sum(jnp.where(lab == 1, w, 0.0))
    return tp, cnt


if __name__ == "__main__":
    key = jax.random.PRNGKey(0)
    k1, k2, k3, k4, k5 = jax.random.split(key, 5)

    # --- test 1: small aligned-ish shape, no weights ---
    N, C, H, W = 2, 2, 16, 16
    preds = jax.random.normal(k1, (N, C, H, W), dtype=jnp.float32)
    labels = jax.random.randint(k2, (N, H, W), minval=-1, maxval=2,
                                dtype=jnp.int32)    # values in {-1, 0, 1}

    metric = Recall(dim=1, ignore_idx=-1, threshold=0.5)
    out = jax.block_until_ready(metric.forward(labels, preds))
    tp_r, cnt_r = _ref_counts(labels, preds, None, -1)
    assert jnp.allclose(out[0], tp_r / cnt_r, atol=1e-6), (out, tp_r / cnt_r)

    # --- test 2: explicit weights ---
    weights = jax.random.uniform(k3, (N, H, W), dtype=jnp.float32)
    metric_w = Recall(dim=1, ignore_idx=-1, threshold=0.5)
    out_w = jax.block_until_ready(metric_w.forward(labels, preds, weights))
    tp_w, cnt_w = _ref_counts(labels, preds, weights, -1)
    assert jnp.allclose(out_w[0], tp_w / cnt_w, atol=1e-5, rtol=1e-5), (out_w, tp_w / cnt_w)

    # --- test 3: awkward spatial size (rows not divisible by the row tile)
    #     exercises the cdiv grid + in-kernel ragged-row masking path ---
    H2, W2 = 96, 96     # p = 9216 -> rows = 72, tile_r = 64, partial last block
    preds2 = jax.random.normal(k4, (N, C, H2, W2), dtype=jnp.float32)
    labels2 = jax.random.randint(k5, (N, H2, W2), minval=-1, maxval=2,
                                 dtype=jnp.int32)
    metric2 = Recall(dim=1, ignore_idx=-1, threshold=0.5)
    out2 = jax.block_until_ready(metric2.forward(labels2, preds2))
    tp2, cnt2 = _ref_counts(labels2, preds2, None, -1)
    assert jnp.allclose(out2[0], tp2 / cnt2, atol=1e-6), (out2, tp2 / cnt2)

    print("KERNEL_OK")
</pallas_src>

<mosaic_0001>
module attributes {stable_mosaic.version = 11 : i64} {
  func.func @_recall_kernel(%arg0: i32, %arg1: i32, %arg2: memref<1x8x128xi32, #tpu.memory_space<vmem>>, %arg3: memref<1x2x8x128xf32, #tpu.memory_space<vmem>>, %arg4: memref<1x2x8x128xf32, #tpu.memory_space<vmem>>) attributes {dimension_semantics = [#tpu.dimension_semantics<parallel>, #tpu.dimension_semantics<arbitrary>], iteration_bounds = array<i64: 2, 1>, scalar_prefetch = 0 : i64, scratch_operands = 0 : i64, tpu.core_type = #tpu.core_type<tc>, window_params = [{transform_indices = @transform_0, window_bounds = array<i64: 1, 8, 128>}, {transform_indices = @transform_1, window_bounds = array<i64: 1, 2, 8, 128>}, {transform_indices = @transform_2, window_bounds = array<i64: 1, 2, 8, 128>}]} {
    %c0_i32 = arith.constant 0 : i32
    %0 = arith.cmpi eq, %arg1, %c0_i32 : i32
    %1 = arith.extui %0 : i1 to i32
    %c0_i32_0 = arith.constant 0 : i32
    %2 = arith.cmpi ne, %1, %c0_i32_0 : i32
    scf.if %2 {
      %cst_27 = arith.constant 0.000000e+00 : f32
      %41 = vector.broadcast %cst_27 : f32 to vector<1x2x8x128xf32>
      %c0_28 = arith.constant 0 : index
      %c0_29 = arith.constant 0 : index
      %c0_30 = arith.constant 0 : index
      %c0_31 = arith.constant 0 : index
      %42 = vector.load %arg4[%c0_28, %c0_29, %c0_30, %c0_31] : memref<1x2x8x128xf32, #tpu.memory_space<vmem>>, vector<1x2x8x128xf32>
      tpu.vector_store %arg4[%c0_28, %c0_29, %c0_30, %c0_31], %41 {strides = array<i32>} : memref<1x2x8x128xf32, #tpu.memory_space<vmem>>, vector<1x2x8x128xf32>,
    } else {
    }
    %cst = arith.constant 0.000000e+00 : f32
    %3 = vector.broadcast %cst : f32 to vector<8x128xf32>
    %c0_i32_1 = arith.constant 0 : i32
    %c8_i32 = arith.constant 8 : i32
    %4 = arith.muli %c0_i32_1, %c8_i32 : i32
    %5 = tpu.assume_multiple %4, 8 : i32
    %c0 = arith.constant 0 : index
    %6 = arith.index_cast %5 : i32 to index
    %c0_2 = arith.constant 0 : index
    %7 = vector.load %arg2[%c0, %6, %c0_2] : memref<1x8x128xi32, #tpu.memory_space<vmem>>, vector<1x8x128xi32>
    %8 = vector.shape_cast %7 : vector<1x8x128xi32> to vector<8x128xi32>
    %c0_3 = arith.constant 0 : index
    %c0_4 = arith.constant 0 : index
    %9 = arith.index_cast %5 : i32 to index
    %c0_5 = arith.constant 0 : index
    %10 = vector.load %arg3[%c0_3, %c0_4, %9, %c0_5] : memref<1x2x8x128xf32, #tpu.memory_space<vmem>>, vector<1x1x8x128xf32>
    %11 = vector.shape_cast %10 : vector<1x1x8x128xf32> to vector<8x128xf32>
    %c0_6 = arith.constant 0 : index
    %c1 = arith.constant 1 : index
    %12 = arith.index_cast %5 : i32 to index
    %c0_7 = arith.constant 0 : index
    %13 = vector.load %arg3[%c0_6, %c1, %12, %c0_7] : memref<1x2x8x128xf32, #tpu.memory_space<vmem>>, vector<1x1x8x128xf32>
    %14 = vector.shape_cast %13 : vector<1x1x8x128xf32> to vector<8x128xf32>
    %15 = arith.cmpf ogt, %14, %11 : vector<8x128xf32>
    %c1_i32 = arith.constant 1 : i32
    %16 = vector.broadcast %c1_i32 : i32 to vector<8x128xi32>
    %17 = arith.cmpi eq, %8, %16 : vector<8x128xi32>
    %18 = arith.andi %17, %15 : vector<8x128xi1>
    %19 = arith.extui %18 : vector<8x128xi1> to vector<8x128xi32>
    %20 = arith.sitofp %19 : vector<8x128xi32> to vector<8x128xf32>
    %21 = arith.extui %17 : vector<8x128xi1> to vector<8x128xi32>
    %22 = arith.sitofp %21 : vector<8x128xi32> to vector<8x128xf32>
    %23 = vector.shape_cast %20 : vector<8x128xf32> to vector<1x8x128xf32>
    %cst_8 = arith.constant dense<0.000000e+00> : vector<8x128xf32>
    %24 = vector.multi_reduction <add>, %23, %cst_8 [0] : vector<1x8x128xf32> to vector<8x128xf32>
    %25 = arith.addf %3, %24 : vector<8x128xf32>
    %26 = vector.shape_cast %22 : vector<8x128xf32> to vector<1x8x128xf32>
    %cst_9 = arith.constant dense<0.000000e+00> : vector<8x128xf32>
    %27 = vector.multi_reduction <add>, %26, %cst_9 [0] : vector<1x8x128xf32> to vector<8x128xf32>
    %28 = arith.addf %3, %27 : vector<8x128xf32>
    %c1_i32_10 = arith.constant 1 : i32
    %c0_11 = arith.constant 0 : index
    %c0_12 = arith.constant 0 : index
    %c0_13 = arith.constant 0 : index
    %c0_14 = arith.constant 0 : index
    %29 = vector.load %arg4[%c0_11, %c0_12, %c0_13, %c0_14] : memref<1x2x8x128xf32, #tpu.memory_space<vmem>>, vector<1x1x8x128xf32>
    %30 = vector.shape_cast %29 : vector<1x1x8x128xf32> to vector<8x128xf32>
    %31 = arith.addf %30, %25 : vector<8x128xf32>
    %c0_15 = arith.constant 0 : index
    %c0_16 = arith.constant 0 : index
    %c0_17 = arith.constant 0 : index
    %c0_18 = arith.constant 0 : index
    %32 = vector.load %arg4[%c0_15, %c0_16, %c0_17, %c0_18] : memref<1x2x8x128xf32, #tpu.memory_space<vmem>>, vector<1x1x8x128xf32>
    %33 = vector.shape_cast %32 : vector<1x1x8x128xf32> to vector<8x128xf32>
    %34 = vector.shape_cast %31 : vector<8x128xf32> to vector<1x1x8x128xf32>
    tpu.vector_store %arg4[%c0_15, %c0_16, %c0_17, %c0_18], %34 {strides = array<i32>} : memref<1x2x8x128xf32, #tpu.memory_space<vmem>>, vector<1x1x8x128xf32>,
    %c0_19 = arith.constant 0 : index
    %c1_20 = arith.constant 1 : index
    %c0_21 = arith.constant 0 : index
    %c0_22 = arith.constant 0 : index
    %35 = vector.load %arg4[%c0_19, %c1_20, %c0_21, %c0_22] : memref<1x2x8x128xf32, #tpu.memory_space<vmem>>, vector<1x1x8x128xf32>
    %36 = vector.shape_cast %35 : vector<1x1x8x128xf32> to vector<8x128xf32>
    %37 = arith.addf %36, %28 : vector<8x128xf32>
    %c0_23 = arith.constant 0 : index
    %c1_24 = arith.constant 1 : index
    %c0_25 = arith.constant 0 : index
    %c0_26 = arith.constant 0 : index
    %38 = vector.load %arg4[%c0_23, %c1_24, %c0_25, %c0_26] : memref<1x2x8x128xf32, #tpu.memory_space<vmem>>, vector<1x1x8x128xf32>
    %39 = vector.shape_cast %38 : vector<1x1x8x128xf32> to vector<8x128xf32>
    %40 = vector.shape_cast %37 : vector<8x128xf32> to vector<1x1x8x128xf32>
    tpu.vector_store %arg4[%c0_23, %c1_24, %c0_25, %c0_26], %40 {strides = array<i32>} : memref<1x2x8x128xf32, #tpu.memory_space<vmem>>, vector<1x1x8x128xf32>,
    return
  }
  func.func @transform_0(%arg0: i32, %arg1: i32) -> (i32, i32, i32) {
    %c0_i32 = arith.constant 0 : i32
    %c0_i32_0 = arith.constant 0 : i32
    return %arg0, %arg1, %c0_i32 : i32, i32, i32
  }
  func.func @transform_1(%arg0: i32, %arg1: i32) -> (i32, i32, i32, i32) {
    %c0_i32 = arith.constant 0 : i32
    %c0_i32_0 = arith.constant 0 : i32
    %c0_i32_1 = arith.constant 0 : i32
    return %arg0, %c0_i32, %arg1, %c0_i32_0 : i32, i32, i32, i32
  }
  func.func @transform_2(%arg0: i32, %arg1: i32) -> (i32, i32, i32, i32) {
    %c0_i32 = arith.constant 0 : i32
    %c0_i32_0 = arith.constant 0 : i32
    %c0_i32_1 = arith.constant 0 : i32
    %c0_i32_2 = arith.constant 0 : i32
    return %arg0, %c0_i32, %c0_i32_0, %c0_i32_1 : i32, i32, i32, i32
  }
}

</mosaic_0001>

<llo_original>
// kernel: tpu_custom_call.1
$region0: #{tpu_custom_call.1}
  #allocation0 [shape = 'u32[]', space=smem, size = 0x4, offset = 0x4, fixed_abs, tag = 'smem constant byte address 0x4 - core index']
  #allocation1 [shape = 'u32[72,128]{1,0:T(1,128)}', space=vmem, size = 0x9000, scoped, tag = 'internal scratch']
  %s0 = inlined_call_operand.hbm [shape: s32[2,8,128], index: 0, kind: input, shape index: {}]
  %s1 = inlined_call_operand.hbm [shape: f32[2,2,8,128], index: 1, kind: input, shape index: {}]
  %s2 = inlined_call_operand.hbm [shape: f32[2,2,8,128], index: 2, kind: output, shape index: {}]
  %s3 = sld [smem:[#allocation0]]
  $region53: #{tpu_custom_call.1} parent=0
    _
  %s5 = ssub.s32 1, %s3
  %s6 = scalar_select 0, %s5, %s3
  $region1: #{tpu_custom_call.1} parent=0
    #allocation2 [shape = 'u8[8192]{0}', space=vmem, size = 0x2000, scoped, tag = 'input window, operand 0']
    #allocation3 [shape = 's32[2]{0}', space=sflag, size = 0x8, scoped, tag = 'scoped memory for tpu_custom_call.1']
    #allocation4 [shape = 's32[2]{0}', space=sflag, size = 0x8, scoped, tag = 'scoped memory for tpu_custom_call.1']
    #allocation5 [shape = 'u8[16384]{0}', space=vmem, size = 0x4000, scoped, tag = 'input window, operand 1']
    #allocation6 [shape = 's32[2]{0}', space=sflag, size = 0x8, scoped, tag = 'scoped memory for tpu_custom_call.1']
    #allocation7 [shape = 'u8[16384]{0}', space=vmem, size = 0x4000, scoped, tag = 'output window, operand 0']
    %7 = vsyncpa [#allocation3], 0
    %s8 = scalar_lea.sflag [#allocation3], 1
    %9 = vsyncpa %s8, 0
    %10 = vsyncpa [#allocation6], 0
    %s11 = scalar_lea.sflag [#allocation6], 1
    %12 = vsyncpa %s11, 0
    %13 = vsyncpa [#allocation4], 0
    %s14 = scalar_lea.sflag [#allocation4], 1
    %15 = vsyncpa %s14, 0
    loop: start=0, step=1, limit=4
    $region2: #{tpu_custom_call.1} parent=1 // loop_pre_header
      _
    $region3: #{tpu_custom_call.1} parent=1 // loop_header
      %s17 = sphi 0, %s21
      %p18 = scmp.ge.s32.totalorder %s17, 4
      %s24 = sphi 0, %s36
      %s25 = sphi 0, %s32
      %s26 = sphi 0, %s24
      %s27 = sphi 0, %s25
      %s28 = sphi 0, %s26
      %s29 = sphi 0, %s27
      %s41 = sphi 0, %s43
      %s44 = sphi 0, %s41
      %s45 = sphi 0, %s44
      %s61 = sphi 0, %s45
      %s69 = sphi 0, %s71
      %s72 = sphi 0, %s69
      %s73 = sphi 0, %s72
      %s89 = sphi 0, %s73
      %s95 = sphi 0, %s97
      %s98 = sphi 0, %s95
      %s99 = sphi 0, %s98
      %s115 = sphi 0, %s99
    $region4: #{tpu_custom_call.1} parent=1 // loop_header_branch
      %20 = sbr.rel (%p18) target = $region8
    $region5: #{tpu_custom_call.1} parent=1 // loop_body
      %s22 = ssub.s32 %s17, 1
      %s23 = ssub.s32 %s17, 2
      %s30 = sadd.s32 1, %s25
      %p31 = scmp.ge.s32.totalorder %s30, 1
      %s32 = scalar_select %p31, 0, %s30
      %s33 = sadd.s32 1, %s24
      %s34 = scalar_select %p31, %s33, %s24
      %p35 = scmp.ge.s32.totalorder %s34, 2
      %s36 = scalar_select %p35, 0, %s34
      %s37 = ssub.s32 %s24, %s36
      %s38 = ssub.s32 %s25, %s32
      %s39 = sor.u32 %s37, %s38
      %p40 = scmp.eq.s32.totalorder %s39, 0
      %s42 = sadd.s32 %s41, 1
      %s43 = scalar_select %p40, %s41, %s42
      %p46 = pneg %p40
      %p47 = scmp.eq.s32.totalorder %s17, 1
      %p48 = por %p46, %p47
      %p49 = scmp.ne.s32.totalorder %s41, %s44
      %p50 = scmp.eq.s32.totalorder %s17, 0
      %p51 = por %p49, %p50
      %p52 = scmp.ne.s32.totalorder %s41, %s44
      %p53 = scmp.eq.s32.totalorder %s22, 1
      %p54 = por %p52, %p53
      %p55 = scmp.ne.s32.totalorder %s44, %s45
      %p56 = scmp.eq.s32.totalorder %s22, 0
      %p57 = por %p55, %p56
      %p58 = scmp.ne.s32.totalorder %s44, %s45
      %p59 = scmp.eq.s32.totalorder %s23, 1
      %p60 = por %p58, %p59
      %p62 = scmp.ne.s32.totalorder %s45, %s61
      %p63 = scmp.eq.s32.totalorder %s23, 0
      %p64 = por %p62, %p63
      %s65 = ssub.s32 %s24, %s36
      %s66 = ssub.s32 %s25, %s32
      %s67 = sor.u32 %s65, %s66
      %p68 = scmp.eq.s32.totalorder %s67, 0
      %s70 = sadd.s32 %s69, 1
      %s71 = scalar_select %p68, %s69, %s70
      %p74 = pneg %p68
      %p75 = scmp.eq.s32.totalorder %s17, 1
      %p76 = por %p74, %p75
      %p77 = scmp.ne.s32.totalorder %s69, %s72
      %p78 = scmp.eq.s32.totalorder %s17, 0
      %p79 = por %p77, %p78
      %p80 = scmp.ne.s32.totalorder %s69, %s72
      %p81 = scmp.eq.s32.totalorder %s22, 1
      %p82 = por %p80, %p81
      %p83 = scmp.ne.s32.totalorder %s72, %s73
      %p84 = scmp.eq.s32.totalorder %s22, 0
      %p85 = por %p83, %p84
      %p86 = scmp.ne.s32.totalorder %s72, %s73
      %p87 = scmp.eq.s32.totalorder %s23, 1
      %p88 = por %p86, %p87
      %p90 = scmp.ne.s32.totalorder %s73, %s89
      %p91 = scmp.eq.s32.totalorder %s23, 0
      %p92 = por %p90, %p91
      %s93 = ssub.s32 %s24, %s36
      %p94 = scmp.eq.s32.totalorder %s93, 0
      %s96 = sadd.s32 %s95, 1
      %s97 = scalar_select %p94, %s95, %s96
      %p100 = pneg %p94
      %p101 = scmp.eq.s32.totalorder %s17, 1
      %p102 = por %p100, %p101
      %p103 = scmp.ne.s32.totalorder %s95, %s98
      %p104 = scmp.eq.s32.totalorder %s17, 0
      %p105 = por %p103, %p104
      %p106 = scmp.ne.s32.totalorder %s95, %s98
      %p107 = scmp.eq.s32.totalorder %s22, 1
      %p108 = por %p106, %p107
      %p109 = scmp.ne.s32.totalorder %s98, %s99
      %p110 = scmp.eq.s32.totalorder %s22, 0
      %p111 = por %p109, %p110
      %p112 = scmp.ne.s32.totalorder %s98, %s99
      %p113 = scmp.eq.s32.totalorder %s23, 1
      %p114 = por %p112, %p113
      %p116 = scmp.ne.s32.totalorder %s99, %s115
      %p117 = scmp.eq.s32.totalorder %s23, 0
      %p118 = por %p116, %p117
      %p119 = scmp.le.s32.totalorder 1, %s17
      %p120 = scmp.lt.s32.totalorder %s17, 3
      %p121 = pnand %p119, %p120
      %p122 = pneg %p121
      // Predicated region
      $region9: #{tpu_custom_call.1} parent=5 // pred_check
        _
      $region10: #{tpu_custom_call.1} parent=5 // pred_check_branch
        %124 = sbr.rel (%p121) target = $region12
      $region11: #{tpu_custom_call.1} parent=5 // pred_region
        %s125 = ssub.s32 %s17, 1
      $region12: #{tpu_custom_call.1} parent=5 // pred_fallthru
        _
      %p126 = scmp.lt.s32.totalorder %s17, 2
      // Predicated region
      $region13: #{tpu_custom_call.1} parent=5 // pred_check
        %p127 = pneg %p126
      $region14: #{tpu_custom_call.1} parent=5 // pred_check_branch
        %129 = sbr.rel (%p127) target = $region16
      $region15: #{tpu_custom_call.1} parent=5 // pred_region
        // Predicated region
        $region17: #{tpu_custom_call.1} parent=15 // pred_check
          %p130 = pneg %p51
        $region18: #{tpu_custom_call.1} parent=15 // pred_check_branch
          %132 = sbr.rel (%p130) target = $region20
        $region19: #{tpu_custom_call.1} parent=15 // pred_region
          %s133 = sand.u32 %s41, 1
          %s134 = scalar_lea.sflag [#allocation3], %s133
          %s135 = sand.u32 %s41, 1
          %s136 = smul.addr %s135, 8
          %s137 = scalar_lea.vmem [#allocation2], %s136
          %139 = vsyncadd %s134, 0
          %s140 = sadd.s32 %s25, %s24
          %s141 = smul.addr %s140, 8
          %s142 = scalar_lea.hbm %s0, %s141
          %s144 = sshll.u32 %s142, 4
          %s145 = int_to_ptr.hbm [resolvable:$true] %s144
          %s146 = sshll.u32 %s137, 4
          %s147 = int_to_ptr.vmem [resolvable:$true] %s146
          %149 = dma.hbm_to_vmem [thread:$0]  %s145, 128, %s147, %s134
        $region20: #{tpu_custom_call.1} parent=15 // pred_fallthru
          _
        // Predicated region
        $region21: #{tpu_custom_call.1} parent=15 // pred_check
          %p150 = pneg %p79
        $region22: #{tpu_custom_call.1} parent=15 // pred_check_branch
          %152 = sbr.rel (%p150) target = $region24
        $region23: #{tpu_custom_call.1} parent=15 // pred_region
          %s153 = sand.u32 %s69, 1
          %s154 = scalar_lea.sflag [#allocation6], %s153
          %s155 = sand.u32 %s69, 1
          %s156 = smul.addr %s155, 16
          %s157 = scalar_lea.vmem [#allocation5], %s156
          %159 = vsyncadd %s154, 0
          %s160 = smul.addr %s24, 2
          %s161 = sadd.s32 %s25, %s160
          %s162 = smul.addr %s161, 8
          %s163 = scalar_lea.hbm %s1, %s162
          %s164 = sshll.u32 %s163, 4
          %s165 = int_to_ptr.hbm [resolvable:$true] %s164
          %s166 = sshll.u32 %s157, 4
          %s167 = int_to_ptr.vmem [resolvable:$true] %s166
          %172 = dma.hbm_to_vmem [thread:$0]  %s165, 256, %s167, %s154, 128, 128, 8
        $region24: #{tpu_custom_call.1} parent=15 // pred_fallthru
          _
      $region16: #{tpu_custom_call.1} parent=5 // pred_fallthru
        _
      %p173 = scmp.le.s32.totalorder 1, %s17
      %p174 = scmp.lt.s32.totalorder %s17, 3
      %p175 = pnand %p173, %p174
      %p176 = pneg %p175
      // Predicated region
      $region25: #{tpu_custom_call.1} parent=5 // pred_check
        _
      $region26: #{tpu_custom_call.1} parent=5 // pred_check_branch
        %178 = sbr.rel (%p175) target = $region28
      $region27: #{tpu_custom_call.1} parent=5 // pred_region
        %s179 = ssub.s32 %s17, 1
        %s180 = sand.u32 %s44, 1
        %s181 = scalar_lea.sflag [#allocation3], %s180
        %s182 = sand.u32 %s44, 1
        %s183 = smul.addr %s182, 8
        %s184 = scalar_lea.vmem [#allocation2], %s183
        // Predicated region
        $region29: #{tpu_custom_call.1} parent=27 // pred_check
          %p185 = pneg %p57
        $region30: #{tpu_custom_call.1} parent=27 // pred_check_branch
          %187 = sbr.rel (%p185) target = $region32
        $region31: #{tpu_custom_call.1} parent=27 // pred_region
          %189 = dma.done %s181, 128
        $region32: #{tpu_custom_call.1} parent=27 // pred_fallthru
          _
        %s190 = sand.u32 %s72, 1
        %s191 = scalar_lea.sflag [#allocation6], %s190
        %s192 = sand.u32 %s72, 1
        %s193 = smul.addr %s192, 16
        %s194 = scalar_lea.vmem [#allocation5], %s193
        // Predicated region
        $region33: #{tpu_custom_call.1} parent=27 // pred_check
          %p195 = pneg %p85
        $region34: #{tpu_custom_call.1} parent=27 // pred_check_branch
          %197 = sbr.rel (%p195) target = $region36
        $region35: #{tpu_custom_call.1} parent=27 // pred_region
          %199 = dma.done %s191, 256
        $region36: #{tpu_custom_call.1} parent=27 // pred_fallthru
          _
        %s200 = sand.u32 %s44, 1
        %s201 = scalar_lea.sflag [#allocation3], %s200
        %s202 = sand.u32 %s44, 1
        %s203 = smul.addr %s202, 8
        %s204 = scalar_lea.vmem [#allocation2], %s203
        %p205 = pneg %p57
        %p206 = pneg %p54
        %s207 = sand.u32 %s72, 1
        %s208 = scalar_lea.sflag [#allocation6], %s207
        %s209 = sand.u32 %s72, 1
        %s210 = smul.addr %s209, 16
        %s211 = scalar_lea.vmem [#allocation5], %s210
        %p212 = pneg %p85
        %p213 = pneg %p82
        %p214 = pneg %p111
        %p215 = pneg %p108
        %s216 = sand.u32 %s98, 1
        %s217 = scalar_lea.sflag [#allocation4], %s216
        %s218 = sand.u32 %s98, 1
        %s219 = smul.addr %s218, 16
        %s220 = scalar_lea.vmem [#allocation7], %s219
        %p221 = scmp.eq.s32.totalorder %s27, 0
        // Predicated region
        $region37: #{tpu_custom_call.1} parent=27 // pred_check
          %p222 = pneg %p221
        $region38: #{tpu_custom_call.1} parent=27 // pred_check_branch
          %224 = sbr.rel (%p222) target = $region40
        $region39: #{tpu_custom_call.1} parent=27 // pred_region
          %225 = vst [vmem:[%s220] sm:$0xff] 0.0
          %226 = vst [vmem:[%s220 + $0x8] sm:$0xff] 0.0
        $region40: #{tpu_custom_call.1} parent=27 // pred_fallthru
          _
        %v227 = vld [vmem:[%s184] sm:$0xff]
        %v228 = vld [vmem:[%s194] sm:$0xff]
        %s229 = sadd.s32 0, 8
        %s230 = scalar_lea.vmem %s194, %s229 [#allocation5]
        %v231 = vld [vmem:[%s230] sm:$0xff]
        %vm232 = vcmp.gt.f32.partialorder %v231, %v228
        %vm233 = vcmp.eq.s32.totalorder %v227, 1
        %vm234 = vmand %vm233, %vm232
        %v235 = vsel %vm234, 1, 0
        %v236 = vcvt.s32.f32 %v235
        %v237 = vsel %vm233, 1, 0
        %v238 = vcvt.s32.f32 %v237
        %v239 = vadd.f32 %v236, 0.0
        %v240 = vadd.f32 %v239, 0.0
        %v241 = vadd.f32 %v238, 0.0
        %v242 = vadd.f32 %v241, 0.0
        %v243 = vld [vmem:[%s220] sm:$0xff]
        %v244 = vadd.f32 %v243, %v240
        %245 = vst [vmem:[%s220] sm:$0xff] %v244
        %s246 = scalar_lea.vmem %s220, 8 [#allocation7]
        %v247 = vld [vmem:[%s246] sm:$0xff]
        %v248 = vadd.f32 %v247, %v242
        %249 = vst [vmem:[%s246] sm:$0xff] %v248
        %s250 = sand.u32 %s98, 1
        %s251 = scalar_lea.sflag [#allocation4], %s250
        %s252 = sand.u32 %s98, 1
        %s253 = smul.addr %s252, 16
        %s254 = scalar_lea.vmem [#allocation7], %s253
        // Predicated region
        $region41: #{tpu_custom_call.1} parent=27 // pred_check
          %p255 = pneg %p108
        $region42: #{tpu_custom_call.1} parent=27 // pred_check_branch
          %257 = sbr.rel (%p255) target = $region44
        $region43: #{tpu_custom_call.1} parent=27 // pred_region
          %259 = vsyncadd %s251, 0
          %s260 = smul.addr %s26, 2
          %s261 = smul.addr %s260, 8
          %s262 = scalar_lea.hbm %s2, %s261
          %s263 = sshll.u32 %s254, 4
          %s264 = int_to_ptr.vmem [resolvable:$true] %s263
          %s265 = sshll.u32 %s262, 4
          %s266 = int_to_ptr.hbm [resolvable:$true] %s265
          %271 = dma.vmem_to_hbm [thread:$0]  %s264, 256, %s266, %s251, 128, 128, 8
        $region44: #{tpu_custom_call.1} parent=27 // pred_fallthru
          _
      $region28: #{tpu_custom_call.1} parent=5 // pred_fallthru
        _
      %p272 = scmp.le.s32.totalorder 2, %s17
      // Predicated region
      $region45: #{tpu_custom_call.1} parent=5 // pred_check
        %p273 = pneg %p272
      $region46: #{tpu_custom_call.1} parent=5 // pred_check_branch
        %275 = sbr.rel (%p273) target = $region48
      $region47: #{tpu_custom_call.1} parent=5 // pred_region
        %s276 = ssub.s32 %s17, 2
        // Predicated region
        $region49: #{tpu_custom_call.1} parent=47 // pred_check
          %p277 = pneg %p114
        $region50: #{tpu_custom_call.1} parent=47 // pred_check_branch
          %279 = sbr.rel (%p277) target = $region52
        $region51: #{tpu_custom_call.1} parent=47 // pred_region
          %s280 = sand.u32 %s99, 1
          %s281 = scalar_lea.sflag [#allocation4], %s280
          %s282 = sand.u32 %s99, 1
          %s283 = smul.addr %s282, 16
          %s284 = scalar_lea.vmem [#allocation7], %s283
          %286 = dma.done %s281, 256
        $region52: #{tpu_custom_call.1} parent=47 // pred_fallthru
          _
      $region48: #{tpu_custom_call.1} parent=5 // pred_fallthru
        _
    $region6: #{tpu_custom_call.1} parent=1 // loop_footer
      %s21 = sadd.s32 1, %s17
    $region7: #{tpu_custom_call.1} parent=1 // loop_footer_branch
      %16 = sbr.rel target = $region3
    $region8: #{tpu_custom_call.1} parent=1 // loop_exit
      _
    %287 = vsyncpa [#allocation3], 1
    %s288 = scalar_lea.sflag [#allocation3], 1
    %289 = vsyncpa %s288, 1
    %290 = vsyncpa [#allocation6], 1
    %s291 = scalar_lea.sflag [#allocation6], 1
    %292 = vsyncpa %s291, 1
    %293 = vsyncpa [#allocation4], 1
    %s294 = scalar_lea.sflag [#allocation4], 1
    %295 = vsyncpa %s294, 1

</llo_original>
